<compile_context>
chip_gen: v7x
topology: tpu7x:2x2x1
jax: 0.10.0
libtpu: 0.0.40
codegen_flags: <defaults>
</compile_context>

<pallas_src>
import jax
import jax.numpy as jnp
from jax.experimental import pallas as pl
from jax.experimental.pallas import tpu as pltpu

_LANE = 128
_SUBLANE = 8
_BLK = _LANE * _SUBLANE                  # 1024 elems = one (8,128) f32 vreg tile
_TILE_ELEMS_CAP = 1024 * 1024            # 4 MiB f32 per tile per operand
_MIN_STEPS = 4                           # keep pipeline + both v7x TCs busy
_VMEM_LIMIT_BYTES = 48 * 1024 * 1024     # explicit; ~2x the double-buffered footprint


def _make_ens_loss_kernel(thr: float):
    thr = float(thr)
    lo_thr = 1.0 - thr

    def kernel(x1_ref, x2_ref, mask_ref, psum_ref):
        a = x1_ref[...].astype(jnp.float32)
        b = x2_ref[...].astype(jnp.float32)

        # Confidence mask via boolean logic + single cast. For thr > 0.5 the
        # two confidence regions are disjoint, so this matches the original
        # float sum-of-products exactly.
        conf_b = ((a > thr) & (b > thr)) | ((a < lo_thr) & (b < lo_thr))
        conf = conf_b.astype(jnp.float32)
        mask_ref[...] = conf.astype(mask_ref.dtype)

        # BCE(p = a*conf, t = (a>0.5)*conf) with PyTorch's -100 log clamp.
        # Since t is binary (thr > 0.5):
        #   conf=0          : p=0, t=0 -> q=1      -> contribution 0
        #   conf=1, a>0.5   : q=p=a
        #   conf=1, a<=0.5  : q=1-p=1-a
        # TODO(synk): on v7x, if the single f32 log ever becomes the EUP
        # binder, a bf16 log (f32 accumulate) would restore the HBM roofline;
        # needs an accuracy re-validation before enabling.
        p = a * conf
        pos = (a > 0.5) & conf_b
        q = jnp.where(pos, p, 1.0 - p)
        bce = -jnp.maximum(jnp.log(q), -100.0)

        # Per-step partial sum, broadcast over this step's private (8,128)
        # psum block (unmasked full-block store); reduced in the wrapper.
        psum_ref[...] = jnp.broadcast_to(jnp.sum(bce), psum_ref.shape)

    return kernel


def ens_loss(inp1, inp2, thr: float = 0.85, mask_dtype=jnp.float32):
    """Returns (loss_BCE scalar float32, Conf_mask of shape (B, 1, H, W)).

    Inputs may be f32 or bf16 probabilities in [0, 1]; math is done in f32.
    """
    assert inp1.shape == inp2.shape and inp1.ndim == 3
    # The single-log BCE rewrite (and a NaN-free original loss) requires
    # disjoint confidence regions, i.e. thr > 0.5 (module default is 0.85).
    assert thr > 0.5, "ens_loss kernel requires thr > 0.5"

    B, H, W = inp1.shape
    n = B * H * W

    x1 = inp1.reshape(-1)
    x2 = inp2.reshape(-1)

    # Flat + padded tiling: pick the number of grid steps from the tile cap,
    # but force >= _MIN_STEPS whenever there are enough (8,128) blocks.
    n_blk = pl.cdiv(n, _BLK)
    cap_blk = _TILE_ELEMS_CAP // _BLK
    steps = max(pl.cdiv(n_blk, cap_blk), min(_MIN_STEPS, n_blk))
    blk_per_step = pl.cdiv(n_blk, steps)
    steps = pl.cdiv(n_blk, blk_per_step)
    n_pad = steps * blk_per_step * _BLK

    if n_pad != n:
        # Pad value 0.5 -> conf mask 0 -> padded elements contribute exactly 0.
        x1 = jnp.pad(x1, (0, n_pad - n), constant_values=0.5)
        x2 = jnp.pad(x2, (0, n_pad - n), constant_values=0.5)

    cols = blk_per_step * _LANE
    rows = steps * _SUBLANE
    x1 = x1.reshape(rows, cols)
    x2 = x2.reshape(rows, cols)

    kernel = _make_ens_loss_kernel(thr)

    mask_pad, psum = pl.pallas_call(
        kernel,
        out_shape=(
            jax.ShapeDtypeStruct((rows, cols), mask_dtype),                # Conf_mask (padded flat)
            jax.ShapeDtypeStruct((steps * _SUBLANE, _LANE), jnp.float32),  # per-step BCE sums
        ),
        grid_spec=pltpu.PrefetchScalarGridSpec(
            num_scalar_prefetch=0,
            grid=(steps,),
            in_specs=[
                pl.BlockSpec((_SUBLANE, cols), lambda i: (i, 0)),
                pl.BlockSpec((_SUBLANE, cols), lambda i: (i, 0)),
            ],
            out_specs=[
                pl.BlockSpec((_SUBLANE, cols), lambda i: (i, 0)),
                pl.BlockSpec((_SUBLANE, _LANE), lambda i: (i, 0)),
            ],
        ),
        compiler_params=pltpu.CompilerParams(
            dimension_semantics=("parallel",),
            vmem_limit_bytes=_VMEM_LIMIT_BYTES,
        ),
    )(x1, x2)

    # Each (8,128) psum block is constant-filled with its step's partial sum;
    # pick exactly one lane per block, then the tiny final reduce + mean.
    per_step = psum.reshape(steps, _BLK)[:, 0]
    loss_bce = jnp.sum(per_step) / jnp.float32(n)

    conf_mask = mask_pad.reshape(-1)[:n].reshape(B, 1, H, W).astype(jnp.float32)
    return loss_bce, conf_mask


def _reference(inp1, inp2, thr=0.85):
    # Pure-JAX reference mirroring the PyTorch code (two-log BCE).
    a = inp1[:, None, :, :].astype(jnp.float32)
    c = inp2[:, None, :, :].astype(jnp.float32)
    conf = ((a > thr).astype(jnp.float32) * (c > thr).astype(jnp.float32)
            + (a < 1 - thr).astype(jnp.float32) * (c < 1 - thr).astype(jnp.float32))
    tar = (a > 0.5).astype(jnp.float32)
    p = a * conf
    t = tar * conf
    bce = -(t * jnp.maximum(jnp.log(p), -100.0)
            + (1.0 - t) * jnp.maximum(jnp.log(1.0 - p), -100.0))
    return jnp.mean(bce), conf


if __name__ == "__main__":
    key = jax.random.PRNGKey(0)
    k1, k2, k3, k4 = jax.random.split(key, 4)

    # Case 1: small, matches the module's typical probability-map usage.
    B, H, W = 2, 16, 16
    inp1 = jax.random.uniform(k1, (B, H, W), dtype=jnp.float32)
    inp2 = jax.random.uniform(k2, (B, H, W), dtype=jnp.float32)
    loss_bce, conf_mask = ens_loss(inp1, inp2, thr=0.85)
    jax.block_until_ready((loss_bce, conf_mask))
    ref_loss, ref_mask = _reference(inp1, inp2, thr=0.85)
    assert conf_mask.shape == (B, 1, H, W)
    assert jnp.array_equal(conf_mask, ref_mask)
    assert jnp.allclose(loss_bce, ref_loss, rtol=1e-5, atol=1e-6)

    # Case 2: unaligned spatial dims -> exercises pad-to-tile and a multi-step grid.
    B2, H2, W2 = 3, 33, 65
    a2 = jax.random.uniform(k3, (B2, H2, W2), dtype=jnp.float32)
    b2 = jax.random.uniform(k4, (B2, H2, W2), dtype=jnp.float32)
    loss2, mask2 = ens_loss(a2, b2, thr=0.85)
    jax.block_until_ready((loss2, mask2))
    ref_loss2, ref_mask2 = _reference(a2, b2, thr=0.85)
    assert mask2.shape == (B2, 1, H2, W2)
    assert jnp.array_equal(mask2, ref_mask2)
    assert jnp.allclose(loss2, ref_loss2, rtol=1e-5, atol=1e-6)

    print("KERNEL_OK")
</pallas_src>

<mosaic_0001>
module attributes {stable_mosaic.version = 11 : i64} {
  func.func @kernel(%arg0: i32, %arg1: memref<8x128xf32, #tpu.memory_space<vmem>>, %arg2: memref<8x128xf32, #tpu.memory_space<vmem>>, %arg3: memref<8x128xf32, #tpu.memory_space<vmem>>, %arg4: memref<8x128xf32, #tpu.memory_space<vmem>>) attributes {dimension_semantics = [#tpu.dimension_semantics<parallel>], iteration_bounds = array<i64: 1>, scalar_prefetch = 0 : i64, scratch_operands = 0 : i64, tpu.core_type = #tpu.core_type<tc>, window_params = [{transform_indices = @transform_0, window_bounds = array<i64: 8, 128>}, {transform_indices = @transform_1, window_bounds = array<i64: 8, 128>}, {transform_indices = @transform_2, window_bounds = array<i64: 8, 128>}, {transform_indices = @transform_3, window_bounds = array<i64: 8, 128>}]} {
    %c0 = arith.constant 0 : index
    %c0_0 = arith.constant 0 : index
    %0 = vector.load %arg1[%c0, %c0_0] : memref<8x128xf32, #tpu.memory_space<vmem>>, vector<8x128xf32>
    %c0_1 = arith.constant 0 : index
    %c0_2 = arith.constant 0 : index
    %1 = vector.load %arg2[%c0_1, %c0_2] : memref<8x128xf32, #tpu.memory_space<vmem>>, vector<8x128xf32>
    %cst = arith.constant 8.500000e-01 : f32
    %2 = vector.broadcast %cst : f32 to vector<8x128xf32>
    %3 = arith.cmpf ogt, %0, %2 : vector<8x128xf32>
    %cst_3 = arith.constant 8.500000e-01 : f32
    %4 = vector.broadcast %cst_3 : f32 to vector<8x128xf32>
    %5 = arith.cmpf ogt, %1, %4 : vector<8x128xf32>
    %6 = arith.andi %3, %5 : vector<8x128xi1>
    %cst_4 = arith.constant 1.500000e-01 : f32
    %7 = vector.broadcast %cst_4 : f32 to vector<8x128xf32>
    %8 = arith.cmpf olt, %0, %7 : vector<8x128xf32>
    %cst_5 = arith.constant 1.500000e-01 : f32
    %9 = vector.broadcast %cst_5 : f32 to vector<8x128xf32>
    %10 = arith.cmpf olt, %1, %9 : vector<8x128xf32>
    %11 = arith.andi %8, %10 : vector<8x128xi1>
    %12 = arith.ori %6, %11 : vector<8x128xi1>
    %13 = arith.extui %12 : vector<8x128xi1> to vector<8x128xi32>
    %14 = arith.sitofp %13 : vector<8x128xi32> to vector<8x128xf32>
    %c0_6 = arith.constant 0 : index
    %c0_7 = arith.constant 0 : index
    %15 = vector.load %arg3[%c0_6, %c0_7] : memref<8x128xf32, #tpu.memory_space<vmem>>, vector<8x128xf32>
    tpu.vector_store %arg3[%c0_6, %c0_7], %14 {strides = array<i32>} : memref<8x128xf32, #tpu.memory_space<vmem>>, vector<8x128xf32>,
    %16 = arith.mulf %0, %14 : vector<8x128xf32>
    %cst_8 = arith.constant 5.000000e-01 : f32
    %17 = vector.broadcast %cst_8 : f32 to vector<8x128xf32>
    %18 = arith.cmpf ogt, %0, %17 : vector<8x128xf32>
    %19 = arith.andi %18, %12 : vector<8x128xi1>
    %cst_9 = arith.constant 1.000000e+00 : f32
    %20 = vector.broadcast %cst_9 : f32 to vector<8x128xf32>
    %21 = arith.subf %20, %16 : vector<8x128xf32>
    %22 = arith.select %19, %16, %21 : vector<8x128xi1>, vector<8x128xf32>
    %23 = math.log %22 : vector<8x128xf32>
    %cst_10 = arith.constant -1.000000e+02 : f32
    %24 = vector.broadcast %cst_10 : f32 to vector<8x128xf32>
    %25 = arith.maximumf %23, %24 : vector<8x128xf32>
    %cst_11 = arith.constant 0.000000e+00 : f32
    %26 = vector.broadcast %cst_11 : f32 to vector<8x128xf32>
    %27 = arith.subf %26, %25 : vector<8x128xf32>
    %28 = vector.shape_cast %27 : vector<8x128xf32> to vector<1x8x128xf32>
    %cst_12 = arith.constant dense<0.000000e+00> : vector<1xf32>
    %29 = vector.multi_reduction <add>, %28, %cst_12 [1, 2] : vector<1x8x128xf32> to vector<1xf32>
    %30 = vector.shape_cast %29 : vector<1xf32> to vector<1x1x1xf32>
    %31 = vector.extract %30[0, 0, 0] : f32 from vector<1x1x1xf32>
    %32 = vector.broadcast %31 : f32 to vector<8x128xf32>
    %c0_13 = arith.constant 0 : index
    %c0_14 = arith.constant 0 : index
    %33 = vector.load %arg4[%c0_13, %c0_14] : memref<8x128xf32, #tpu.memory_space<vmem>>, vector<8x128xf32>
    tpu.vector_store %arg4[%c0_13, %c0_14], %32 {strides = array<i32>} : memref<8x128xf32, #tpu.memory_space<vmem>>, vector<8x128xf32>,
    return
  }
  func.func @transform_0(%arg0: i32) -> (i32, i32) {
    %c0_i32 = arith.constant 0 : i32
    %c0_i32_0 = arith.constant 0 : i32
    return %arg0, %c0_i32 : i32, i32
  }
  func.func @transform_1(%arg0: i32) -> (i32, i32) {
    %c0_i32 = arith.constant 0 : i32
    %c0_i32_0 = arith.constant 0 : i32
    return %arg0, %c0_i32 : i32, i32
  }
  func.func @transform_2(%arg0: i32) -> (i32, i32) {
    %c0_i32 = arith.constant 0 : i32
    %c0_i32_0 = arith.constant 0 : i32
    return %arg0, %c0_i32 : i32, i32
  }
  func.func @transform_3(%arg0: i32) -> (i32, i32) {
    %c0_i32 = arith.constant 0 : i32
    %c0_i32_0 = arith.constant 0 : i32
    return %arg0, %c0_i32 : i32, i32
  }
}

</mosaic_0001>

<llo_original>
// kernel: tpu_custom_call.1
$region0: #{tpu_custom_call.1}
  #allocation0 [shape = 'u32[]', space=smem, size = 0x4, offset = 0x4, fixed_abs, tag = 'smem constant byte address 0x4 - core index']
  #allocation1 [shape = 'u32[144,128]{1,0:T(1,128)}', space=vmem, size = 0x12000, scoped, tag = 'internal scratch']
  %s0 = inlined_call_operand.hbm [shape: f32[8,128], index: 0, kind: input, shape index: {}]
  %s1 = inlined_call_operand.hbm [shape: f32[8,128], index: 1, kind: input, shape index: {}]
  %s2 = inlined_call_operand.hbm [shape: f32[8,128], index: 2, kind: output, shape index: {0}]
  %s3 = inlined_call_operand.hbm [shape: f32[8,128], index: 3, kind: output, shape index: {1}]
  %4 = xla_tuple %s2, %s3
  %s5 = sld [smem:[#allocation0]]
  $region34: #{tpu_custom_call.1} parent=0
    _
  %s7 = ssub.s32 1, %s5
  %s8 = scalar_select 0, %s7, %s5
  $region1: #{tpu_custom_call.1} parent=0
    #allocation2 [shape = 'u8[4096]{0}', space=vmem, size = 0x1000, scoped, tag = 'input window, operand 0, single buffered']
    #allocation3 [shape = 's32[1]{0}', space=sflag, size = 0x4, scoped, tag = 'scoped memory for tpu_custom_call.1']
    #allocation4 [shape = 's32[1]{0}', space=sflag, size = 0x4, scoped, tag = 'scoped memory for tpu_custom_call.1']
    #allocation5 [shape = 'u8[4096]{0}', space=vmem, size = 0x1000, scoped, tag = 'input window, operand 1, single buffered']
    #allocation6 [shape = 's32[1]{0}', space=sflag, size = 0x4, scoped, tag = 'scoped memory for tpu_custom_call.1']
    #allocation7 [shape = 'u8[4096]{0}', space=vmem, size = 0x1000, scoped, tag = 'output window, operand 0, single buffered']
    #allocation8 [shape = 'u8[4096]{0}', space=vmem, size = 0x1000, scoped, tag = 'output window, operand 1, single buffered']
    #allocation9 [shape = 's32[1]{0}', space=sflag, size = 0x4, scoped, tag = 'scoped memory for tpu_custom_call.1']
    %9 = vsyncpa [#allocation3], 0
    %10 = vsyncpa [#allocation6], 0
    %11 = vsyncpa [#allocation4], 0
    %12 = vsyncpa [#allocation9], 0
    // Predicated region
    $region2: #{tpu_custom_call.1} parent=1 // pred_check
      _
    $region3: #{tpu_custom_call.1} parent=1 // pred_check_branch
      %14 = sbr.rel (0) target = $region5
    $region4: #{tpu_custom_call.1} parent=1 // pred_region
      %s16 = ssub.s32 128, 128
      %17 = vsyncadd [#allocation3], %s16
      %s19 = sshll.u32 [#allocation2], 4
      %s20 = int_to_ptr.vmem [resolvable:$true] %s19
      %22 = dma.hbm_to_vmem [thread:$0]  %s0, 128, %s20, [#allocation3]
    $region5: #{tpu_custom_call.1} parent=1 // pred_fallthru
      _
    // Predicated region
    $region6: #{tpu_custom_call.1} parent=1 // pred_check
      _
    $region7: #{tpu_custom_call.1} parent=1 // pred_check_branch
      %24 = sbr.rel (0) target = $region9
    $region8: #{tpu_custom_call.1} parent=1 // pred_region
      %s26 = ssub.s32 128, 128
      %27 = vsyncadd [#allocation6], %s26
      %s29 = sshll.u32 [#allocation5], 4
      %s30 = int_to_ptr.vmem [resolvable:$true] %s29
      %32 = dma.hbm_to_vmem [thread:$0]  %s1, 128, %s30, [#allocation6]
    $region9: #{tpu_custom_call.1} parent=1 // pred_fallthru
      _
    // Predicated region
    $region10: #{tpu_custom_call.1} parent=1 // pred_check
      _
    $region11: #{tpu_custom_call.1} parent=1 // pred_check_branch
      %34 = sbr.rel (0) target = $region13
    $region12: #{tpu_custom_call.1} parent=1 // pred_region
      %35 = dma.done [#allocation3], 128
    $region13: #{tpu_custom_call.1} parent=1 // pred_fallthru
      _
    // Predicated region
    $region14: #{tpu_custom_call.1} parent=1 // pred_check
      _
    $region15: #{tpu_custom_call.1} parent=1 // pred_check_branch
      %37 = sbr.rel (0) target = $region17
    $region16: #{tpu_custom_call.1} parent=1 // pred_region
      %38 = dma.done [#allocation6], 128
    $region17: #{tpu_custom_call.1} parent=1 // pred_fallthru
      _
    %v39 = vld [vmem:[#allocation2] sm:$0xff]
    %v40 = vld [vmem:[#allocation5] sm:$0xff]
    %vm41 = vcmp.gt.f32.partialorder %v39, 0.85
    %vm42 = vcmp.gt.f32.partialorder %v40, 0.85
    %vm43 = vmand %vm41, %vm42
    %vm44 = vcmp.lt.f32.partialorder %v39, 0.15
    %vm45 = vcmp.lt.f32.partialorder %v40, 0.15
    %vm46 = vmand %vm44, %vm45
    %vm47 = vmor %vm43, %vm46
    %v48 = vsel %vm47, 1, 0
    %v49 = vcvt.s32.f32 %v48
    %50 = vst [vmem:[#allocation7] sm:$0xff] %v49
    %v51 = vmul.f32 %v39, %v49
    %vm52 = vcmp.gt.f32.partialorder %v39, 0.5
    %vm53 = vmand %vm52, %vm47
    %v54 = vsub.f32 1.0, %v51
    %v55 = vsel %vm53, %v51, %v54
    %v56 = vlog2.pop %v55
    %v57 = vmul.f32 %v56, 0.6931472
    %v58 = vmax.f32 %v57, -100.0
    %v59 = vsub.f32 0.0, %v58
    %60 = vadd.xlane.f32.xlu0 %v59
    %v61 = vpop.xlane.xlu0 %60
    %v62 = vrot.slane %v61, 4
    %v63 = vadd.f32 %v61, %v62
    %v64 = vrot.slane %v63, 2
    %v65 = vadd.f32 %v63, %v64
    %v66 = vrot.slane %v65, 1
    %v67 = vadd.f32 %v65, %v66
    %s68 = vtos %v67
    %v69 = vstv %s68
    %70 = vst [vmem:[#allocation8] sm:$0xff] %v69
    // Predicated region
    $region18: #{tpu_custom_call.1} parent=1 // pred_check
      _
    $region19: #{tpu_custom_call.1} parent=1 // pred_check_branch
      %72 = sbr.rel (0) target = $region21
    $region20: #{tpu_custom_call.1} parent=1 // pred_region
      %s74 = ssub.s32 128, 128
      %75 = vsyncadd [#allocation4], %s74
      %s77 = sshll.u32 [#allocation7], 4
      %s78 = int_to_ptr.vmem [resolvable:$true] %s77
      %80 = dma.vmem_to_hbm [thread:$0]  %s78, 128, %s2, [#allocation4]
    $region21: #{tpu_custom_call.1} parent=1 // pred_fallthru
      _
    // Predicated region
    $region22: #{tpu_custom_call.1} parent=1 // pred_check
      _
    $region23: #{tpu_custom_call.1} parent=1 // pred_check_branch
      %82 = sbr.rel (0) target = $region25
    $region24: #{tpu_custom_call.1} parent=1 // pred_region
      %s84 = ssub.s32 128, 128
      %85 = vsyncadd [#allocation9], %s84
      %s87 = sshll.u32 [#allocation8], 4
      %s88 = int_to_ptr.vmem [resolvable:$true] %s87
      %90 = dma.vmem_to_hbm [thread:$0]  %s88, 128, %s3, [#allocation9]
    $region25: #{tpu_custom_call.1} parent=1 // pred_fallthru
      _
    // Predicated region
    $region26: #{tpu_custom_call.1} parent=1 // pred_check
      _
    $region27: #{tpu_custom_call.1} parent=1 // pred_check_branch
      %92 = sbr.rel (0) target = $region29
    $region28: #{tpu_custom_call.1} parent=1 // pred_region
      %93 = dma.done [#allocation4], 128
    $region29: #{tpu_custom_call.1} parent=1 // pred_fallthru
      _
    // Predicated region
    $region30: #{tpu_custom_call.1} parent=1 // pred_check
      _
    $region31: #{tpu_custom_call.1} parent=1 // pred_check_branch
      %95 = sbr.rel (0) target = $region33
    $region32: #{tpu_custom_call.1} parent=1 // pred_region
      %96 = dma.done [#allocation9], 128
    $region33: #{tpu_custom_call.1} parent=1 // pred_fallthru
      _
    %97 = vsyncpa [#allocation3], 1
    %98 = vsyncpa [#allocation6], 1
    %99 = vsyncpa [#allocation4], 1
    %100 = vsyncpa [#allocation9], 1

</llo_original>
